<compile_context>
chip_gen: v7x
topology: tpu7x:2x2x1
jax: 0.10.0
libtpu: 0.0.40
codegen_flags: <defaults>
</compile_context>

<pallas_src>
import math
import functools

import jax
import jax.numpy as jnp
from jax.experimental import pallas as pl
from jax.experimental.pallas import tpu as pltpu


def _round_up(x, m):
    return ((x + m - 1) // m) * m


# --------------------------- Focal loss (CenterNet _neg_loss) ---------------------------
def _focal_kernel(x_ref, gt_ref, out_ref, *, n_valid, tile_rows):
    t = pl.program_id(0)
    x = x_ref[...]                                    # (TR, 128) raw logits
    gt = gt_ref[...]
    row = jax.lax.broadcasted_iota(jnp.int32, x.shape, 0)
    lanei = jax.lax.broadcasted_iota(jnp.int32, x.shape, 1)
    idx = (t * tile_rows + row) * 128 + lanei
    valid = (idx < n_valid).astype(jnp.float32)       # mask the padded tail

    # _sigmoid(): pred = clip(sigmoid(x), 1e-4, 1-1e-4)
    # only 2 transcendentals: sigmoid + log(pred); log(1-pred) = clip(log(pred)-x)
    s = jax.nn.sigmoid(x)
    pred = jnp.clip(s, 1e-4, 1.0 - 1e-4)
    lp = jnp.log(pred)
    lq = jnp.clip(lp - x, math.log(1e-4), math.log(1.0 - 1e-4))

    pos_inds = (gt == 1.0).astype(jnp.float32) * valid
    neg_inds = (gt < 1.0).astype(jnp.float32) * valid
    neg_w = (1.0 - gt) ** 4
    pos_loss = lp * (1.0 - pred) ** 2 * pos_inds
    neg_loss = lq * (pred * pred) * neg_w * neg_inds

    lane = jax.lax.broadcasted_iota(jnp.int32, (1, 128), 1)
    out_ref[...] = (jnp.where(lane == 0, jnp.sum(pos_loss), 0.0)
                    + jnp.where(lane == 1, jnp.sum(neg_loss), 0.0)
                    + jnp.where(lane == 2, jnp.sum(pos_inds), 0.0))


def focal_loss(pred_nchw, gt_nchw, tile_rows=None):
    B, C, H, W = pred_nchw.shape
    N = B * C * H * W
    n_rows = pl.cdiv(N, 128)
    if tile_rows is None:
        # large, sublane-dense tiles (<= ~1 MiB / block / array); keep >= 2 blocks
        # when there is enough work so a v7x megacore can split the parallel axis.
        tile_rows = min(2048, _round_up(n_rows, 8))
        if n_rows > 16 and _round_up(n_rows, tile_rows) // tile_rows < 2:
            tile_rows = _round_up(pl.cdiv(n_rows, 2), 8)
    else:
        tile_rows = max(8, _round_up(tile_rows, 8))
    rows_p = _round_up(n_rows, tile_rows)
    nb = rows_p // tile_rows

    def prep(x):
        x = x.reshape(-1).astype(jnp.float32)          # fold B*C into the stream
        x = jnp.pad(x, (0, rows_p * 128 - N))
        return x.reshape(rows_p, 128)

    p2, g2 = prep(pred_nchw), prep(gt_nchw)
    out = pl.pallas_call(
        functools.partial(_focal_kernel, n_valid=N, tile_rows=tile_rows),
        out_shape=jax.ShapeDtypeStruct((nb, 1, 128), jnp.float32),
        grid=(nb,),
        in_specs=[pl.BlockSpec((tile_rows, 128), lambda t: (t, 0)),
                  pl.BlockSpec((tile_rows, 128), lambda t: (t, 0))],
        out_specs=pl.BlockSpec((None, 1, 128), lambda t: (t, 0, 0)),
        compiler_params=pltpu.CompilerParams(dimension_semantics=("parallel",)),
    )(p2, g2)

    part = out.reshape(nb, 128)
    pos = jnp.sum(part[:, 0])
    neg = jnp.sum(part[:, 1])
    npos = jnp.sum(part[:, 2])
    return jnp.where(npos == 0, -neg, -(pos + neg) / npos)


# --------------------- Kernel A: index-driven per-object column gather ---------------------
def _gather_kernel(ind_ref, wh_ref, reg_ref, id_ref, whg_ref, regg_ref, emb_ref):
    # grid = (B, K); only the 128-lane strip holding object (b, k) was DMA'd.
    b = pl.program_id(0)
    k = pl.program_id(1)
    r = ind_ref[b, k] % 128
    lane = jax.lax.broadcasted_iota(jnp.int32, (1, 128), 1)
    sel = (lane == r).astype(jnp.float32)              # (1, 128) lane one-hot

    def gather(src_ref, dst_ref):
        col = jnp.sum(src_ref[...] * sel, axis=1, keepdims=True)   # (C, 1)
        dst_ref[...] = col.reshape(dst_ref.shape)                  # (1, C, 1)

    gather(wh_ref, whg_ref)
    gather(reg_ref, regg_ref)
    gather(id_ref, emb_ref)


# --------- Kernel B: batch-folded classifier GEMM + online-LSE CE + wh/reg masked L1 ---------
def _id_cls_kernel(emb_ref, whg_ref, wht_ref, regg_ref, regt_ref, mask_ref, ids_ref,
                   wT_ref, b_ref, out_ref, embn_sc, m_sc, s_sc, p_sc, *, emb_scale):
    nt = pl.program_id(1)
    NT = pl.num_programs(1)
    TR, TN = emb_ref.shape[0], wT_ref.shape[1]

    # -- first nID tile for this row-tile: normalize embeddings, init LSE state
    @pl.when(nt == 0)
    def _():
        e = emb_ref[...].astype(jnp.float32)                        # (TR, E)
        nrm = jnp.sqrt(jnp.sum(e * e, axis=1, keepdims=True))
        embn_sc[...] = (emb_scale * e / jnp.maximum(nrm, 1e-12)).astype(embn_sc.dtype)
        m_sc[...] = jnp.full_like(m_sc, -1e30)                      # finite floor, no -inf
        s_sc[...] = jnp.zeros_like(s_sc)
        p_sc[...] = jnp.zeros_like(p_sc)

    # -- every nID tile: (TR, E) x (E, TN) GEMM, nID on lanes, online logsumexp
    logits = jnp.dot(embn_sc[...], wT_ref[...],
                     preferred_element_type=jnp.float32) + b_ref[...]   # (TR, TN)
    ids = ids_ref[...]                                              # (TR, 1) int32
    lanes = jax.lax.broadcasted_iota(jnp.int32, (TR, TN), 1)
    hit = lanes == (ids - nt * TN)
    p_sc[...] += jnp.sum(jnp.where(hit, logits, 0.0), axis=1, keepdims=True)
    m_old = m_sc[...]
    m_new = jnp.maximum(m_old, jnp.max(logits, axis=1, keepdims=True))
    s_sc[...] = s_sc[...] * jnp.exp(m_old - m_new) + jnp.sum(
        jnp.exp(logits - m_new), axis=1, keepdims=True)
    m_sc[...] = m_new

    # -- last nID tile: masked L1 (wh/reg) + CE finalize, emit one lane-dense row
    @pl.when(nt == NT - 1)
    def _():
        maskv = mask_ref[...]                                       # (TR, 1) f32
        wh_abs = jnp.sum(jnp.abs(whg_ref[...] * maskv - wht_ref[...] * maskv))
        rg_abs = jnp.sum(jnp.abs(regg_ref[...] * maskv - regt_ref[...] * maskv))
        msum = jnp.sum(maskv) * 2.0                                 # mask expanded over C=2
        valid = jnp.logical_and(maskv > 0.0, ids_ref[...] != -1).astype(jnp.float32)
        lse = m_sc[...] + jnp.log(s_sc[...])
        ce = jnp.sum((lse - p_sc[...]) * valid)
        vcnt = jnp.sum(valid)
        lane = jax.lax.broadcasted_iota(jnp.int32, (1, 128), 1)
        out_ref[...] = (jnp.where(lane == 0, wh_abs, 0.0)
                        + jnp.where(lane == 1, rg_abs, 0.0)
                        + jnp.where(lane == 2, msum, 0.0)
                        + jnp.where(lane == 3, ce, 0.0)
                        + jnp.where(lane == 4, vcnt, 0.0))


def det_id_losses(wh_nchw, reg_nchw, id_nchw, reg_mask, ind, wh_t, reg_t, ids,
                  classifier_w, classifier_b, emb_scale,
                  tile_nid=None, tile_rows=None, classifier_dtype=jnp.float32):
    B, _, H, W = wh_nchw.shape
    E = id_nchw.shape[1]
    K = ind.shape[1]
    HW = H * W
    HWp = _round_up(HW, 128)

    def prep(x):
        c = x.shape[1]
        x = x.reshape(B, c, HW).astype(jnp.float32)     # free reshape (no transpose)
        if HWp != HW:
            x = jnp.pad(x, ((0, 0), (0, 0), (0, HWp - HW)))
        return x                                        # (B, c, HWp), stays in HBM

    whm, regm, idm = prep(wh_nchw), prep(reg_nchw), prep(id_nchw)

    maskf = reg_mask.astype(jnp.float32).reshape(B, K)
    # masked objects -> strip 0 (dedupes their DMAs); clip keeps index maps in range
    ind_g = jnp.clip(jnp.where(maskf > 0, ind.astype(jnp.int32), 0), 0, HW - 1)

    # ---- kernel A: gather only the K needed columns per batch (no full-map streaming)
    gspec_a = pltpu.PrefetchScalarGridSpec(
        num_scalar_prefetch=1,
        grid=(B, K),
        in_specs=[
            pl.BlockSpec((None, 2, 128), lambda b, k, ind: (b, 0, ind[b, k] // 128)),
            pl.BlockSpec((None, 2, 128), lambda b, k, ind: (b, 0, ind[b, k] // 128)),
            pl.BlockSpec((None, E, 128), lambda b, k, ind: (b, 0, ind[b, k] // 128)),
        ],
        out_specs=[
            pl.BlockSpec((None, 1, 2, 1), lambda b, k, ind: (b, k, 0, 0)),
            pl.BlockSpec((None, 1, 2, 1), lambda b, k, ind: (b, k, 0, 0)),
            pl.BlockSpec((None, 1, E, 1), lambda b, k, ind: (b, k, 0, 0)),
        ],
    )
    whg, regg, embg = pl.pallas_call(
        _gather_kernel,
        grid_spec=gspec_a,
        out_shape=[jax.ShapeDtypeStruct((B, K, 2, 1), jnp.float32),
                   jax.ShapeDtypeStruct((B, K, 2, 1), jnp.float32),
                   jax.ShapeDtypeStruct((B, K, E, 1), jnp.float32)],
        compiler_params=pltpu.CompilerParams(
            dimension_semantics=("parallel", "parallel")),
    )(ind_g, whm, regm, idm)

    # ---- batch-folded rows for the classifier kernel
    BK = B * K
    if tile_rows is None:
        tile_rows = min(256, _round_up(BK, 8))
    tile_rows = max(8, _round_up(tile_rows, 8))
    BKp = _round_up(BK, tile_rows)
    NR = BKp // tile_rows

    def rows(x, c):
        x = x.reshape(BK, c).astype(jnp.float32)
        if BKp != BK:
            x = jnp.pad(x, ((0, BKp - BK), (0, 0)))
        return x

    emb_rows = rows(embg, E)
    whg_rows, regg_rows = rows(whg, 2), rows(regg, 2)
    wht_rows, regt_rows = rows(wh_t, 2), rows(reg_t, 2)
    mask_rows = rows(reg_mask, 1)
    ids_rows = ids.astype(jnp.int32).reshape(BK, 1)
    if BKp != BK:
        ids_rows = jnp.pad(ids_rows, ((0, BKp - BK), (0, 0)), constant_values=-1)

    nID = classifier_w.shape[0]
    if tile_nid is None:
        tile_nid = min(_round_up(nID, 256), 1024)       # 256-aligned nID tiles by default
    else:
        tile_nid = max(128, _round_up(tile_nid, 128))
    NIDp = _round_up(nID, tile_nid)
    NT = NIDp // tile_nid
    wT = classifier_w.astype(jnp.float32).T             # (E, nID) one-time tiny transpose
    bias = classifier_b.astype(jnp.float32).reshape(1, nID)
    if NIDp != nID:
        wT = jnp.pad(wT, ((0, 0), (0, NIDp - nID)))
        bias = jnp.pad(bias, ((0, 0), (0, NIDp - nID)), constant_values=-1e30)
    wT = wT.astype(classifier_dtype)

    gspec_b = pltpu.PrefetchScalarGridSpec(
        num_scalar_prefetch=0,
        grid=(NR, NT),
        in_specs=[
            pl.BlockSpec((tile_rows, E), lambda r, t: (r, 0)),
            pl.BlockSpec((tile_rows, 2), lambda r, t: (r, 0)),
            pl.BlockSpec((tile_rows, 2), lambda r, t: (r, 0)),
            pl.BlockSpec((tile_rows, 2), lambda r, t: (r, 0)),
            pl.BlockSpec((tile_rows, 2), lambda r, t: (r, 0)),
            pl.BlockSpec((tile_rows, 1), lambda r, t: (r, 0)),
            pl.BlockSpec((tile_rows, 1), lambda r, t: (r, 0)),
            pl.BlockSpec((E, tile_nid), lambda r, t: (0, t)),
            pl.BlockSpec((1, tile_nid), lambda r, t: (0, t)),
        ],
        out_specs=pl.BlockSpec((None, 1, 128), lambda r, t: (r, 0, 0)),
        scratch_shapes=[pltpu.VMEM((tile_rows, E), classifier_dtype),  # normalized emb
                        pltpu.VMEM((tile_rows, 1), jnp.float32),       # running max
                        pltpu.VMEM((tile_rows, 1), jnp.float32),       # running sum-exp
                        pltpu.VMEM((tile_rows, 1), jnp.float32)],      # target logit
    )
    out = pl.pallas_call(
        functools.partial(_id_cls_kernel, emb_scale=float(emb_scale)),
        grid_spec=gspec_b,
        out_shape=jax.ShapeDtypeStruct((NR, 1, 128), jnp.float32),
        compiler_params=pltpu.CompilerParams(
            dimension_semantics=("parallel", "arbitrary")),
    )(emb_rows, whg_rows, wht_rows, regg_rows, regt_rows, mask_rows, ids_rows, wT, bias)

    rowsum = out.reshape(NR, 128)
    wh_abs = jnp.sum(rowsum[:, 0])
    rg_abs = jnp.sum(rowsum[:, 1])
    msum = jnp.sum(rowsum[:, 2])
    ce = jnp.sum(rowsum[:, 3])
    vcnt = jnp.sum(rowsum[:, 4])
    wh_loss = wh_abs / (msum + 1e-4)
    off_loss = rg_abs / (msum + 1e-4)
    id_loss = ce / jnp.maximum(vcnt, 1.0)               # 0/0 guard (== CE mean when vcnt>0)
    return wh_loss, off_loss, id_loss


# --------------------------------- MotLoss module ---------------------------------
class MotLossPallas:
    def __init__(self, mse_loss=False, reg_loss='l1', dense_wh=False,
                 cat_spec_wh=False, reid_dim=32, nID=32, norm_wh=False,
                 num_stacks=1, wh_weight=0.1, off_weight=1.0, id_weight=1.0,
                 reg_offset=True, hm_weight=1.0, param_key=None,
                 focal_tile_rows=None, tile_nid=None, id_tile_rows=None,
                 classifier_dtype=jnp.float32):
        # TODO(synk): MSE heatmap, dense_wh, norm_wh, cat_spec_wh and 'sl1' reg-loss
        # branches are not implemented; only the default FairMOT config (focal + RegL1).
        assert not mse_loss and reg_loss == 'l1'
        assert not (dense_wh or cat_spec_wh or norm_wh)
        self.num_stacks = num_stacks
        self.wh_weight = wh_weight
        self.off_weight = off_weight
        self.id_weight = id_weight
        self.reg_offset = reg_offset
        self.hm_weight = hm_weight
        self.emb_dim = reid_dim
        self.nID = nID
        self.emb_scale = math.sqrt(2) * math.log(nID - 1)
        self.focal_tile_rows = focal_tile_rows
        self.tile_nid = tile_nid
        self.id_tile_rows = id_tile_rows
        self.classifier_dtype = classifier_dtype

        if param_key is None:
            param_key = jax.random.PRNGKey(12345)
        kw, kb = jax.random.split(param_key)
        bound = 1.0 / math.sqrt(reid_dim)
        # nn.Linear(emb_dim, nID): weight (nID, emb_dim), bias (nID,)
        self.classifier_w = jax.random.uniform(kw, (nID, reid_dim), jnp.float32,
                                               -bound, bound)
        self.classifier_b = jax.random.uniform(kb, (nID,), jnp.float32, -bound, bound)
        self.s_det = jnp.full((1,), -1.85, jnp.float32)
        self.s_id = jnp.full((1,), -1.05, jnp.float32)

    def forward(self, outputs, batch):
        zero = jnp.zeros((), jnp.float32)
        hm_loss = wh_loss = off_loss = id_loss = zero
        need_det_id = (self.wh_weight > 0 or self.id_weight > 0
                       or (self.reg_offset and self.off_weight > 0))
        for s in range(self.num_stacks):
            output = outputs[s]
            hm_loss = hm_loss + focal_loss(output['hm'], batch['hm'],
                                           tile_rows=self.focal_tile_rows) / self.num_stacks
            if need_det_id:
                wh_l, off_l, id_l = det_id_losses(
                    output['wh'], output['reg'], output['id'],
                    batch['reg_mask'], batch['ind'], batch['wh'], batch['reg'],
                    batch['ids'], self.classifier_w, self.classifier_b,
                    self.emb_scale, tile_nid=self.tile_nid,
                    tile_rows=self.id_tile_rows,
                    classifier_dtype=self.classifier_dtype)
                if self.wh_weight > 0:
                    wh_loss = wh_loss + wh_l / self.num_stacks
                if self.reg_offset and self.off_weight > 0:
                    off_loss = off_loss + off_l / self.num_stacks
                if self.id_weight > 0:
                    # (note: original code does NOT divide id_loss by num_stacks)
                    id_loss = id_loss + id_l
        det_loss = (self.hm_weight * hm_loss + self.wh_weight * wh_loss
                    + self.off_weight * off_loss)
        loss = (jnp.exp(-self.s_det) * det_loss + jnp.exp(-self.s_id) * id_loss
                + (self.s_det + self.s_id))
        loss = loss * 0.5
        loss_stats = {'loss': loss, 'hm_loss': hm_loss, 'wh_loss': wh_loss,
                      'off_loss': off_loss, 'id_loss': id_loss}
        return loss, loss_stats


# --------------------------------- pure-JAX reference ---------------------------------
def _reference_forward(mod, outputs, batch):
    def nlc(x):
        B, C, H, W = x.shape
        return x.transpose(0, 2, 3, 1).reshape(B, H * W, C)

    hm_loss = wh_loss = off_loss = id_loss = jnp.zeros((), jnp.float32)
    for s in range(mod.num_stacks):
        output = outputs[s]
        pred = jnp.clip(jax.nn.sigmoid(output['hm']), 1e-4, 1.0 - 1e-4)
        gt = batch['hm']
        pos_inds = (gt == 1.0).astype(jnp.float32)
        neg_inds = (gt < 1.0).astype(jnp.float32)
        neg_w = (1.0 - gt) ** 4
        pos_l = (jnp.log(pred) * (1.0 - pred) ** 2 * pos_inds).sum()
        neg_l = (jnp.log(1.0 - pred) * pred ** 2 * neg_w * neg_inds).sum()
        npos = pos_inds.sum()
        hm_loss += jnp.where(npos == 0, -neg_l, -(pos_l + neg_l) / npos) / mod.num_stacks

        def gather(feat_nchw):
            f = nlc(feat_nchw)
            return jnp.take_along_axis(f, batch['ind'][:, :, None].astype(jnp.int32), axis=1)

        def reg_l1(feat_nchw, target):
            p = gather(feat_nchw)
            m = jnp.broadcast_to(batch['reg_mask'].astype(jnp.float32)[:, :, None], p.shape)
            return jnp.abs(p * m - target * m).sum() / (m.sum() + 1e-4)

        if mod.wh_weight > 0:
            wh_loss += reg_l1(output['wh'], batch['wh']) / mod.num_stacks
        if mod.reg_offset and mod.off_weight > 0:
            off_loss += reg_l1(output['reg'], batch['reg']) / mod.num_stacks
        if mod.id_weight > 0:
            id_head = gather(output['id'])
            nrm = jnp.sqrt(jnp.sum(id_head * id_head, axis=-1, keepdims=True))
            id_head = mod.emb_scale * id_head / jnp.maximum(nrm, 1e-12)
            logits = id_head @ mod.classifier_w.T + mod.classifier_b
            logp = jax.nn.log_softmax(logits, axis=-1)
            valid = ((batch['reg_mask'] > 0) & (batch['ids'] != -1)).astype(jnp.float32)
            tgt = jnp.clip(batch['ids'], 0, None)
            picked = jnp.take_along_axis(logp, tgt[:, :, None], axis=-1)[..., 0]
            id_loss += (-picked * valid).sum() / jnp.maximum(valid.sum(), 1.0)

    det_loss = mod.hm_weight * hm_loss + mod.wh_weight * wh_loss + mod.off_weight * off_loss
    loss = jnp.exp(-mod.s_det) * det_loss + jnp.exp(-mod.s_id) * id_loss + (mod.s_det + mod.s_id)
    loss = loss * 0.5
    return loss, {'loss': loss, 'hm_loss': hm_loss, 'wh_loss': wh_loss,
                  'off_loss': off_loss, 'id_loss': id_loss}


if __name__ == "__main__":
    B, H, W = 2, 16, 16
    K = 8        # max objects
    E = 32       # reid_dim
    NID = 512    # number of identities

    key = jax.random.PRNGKey(0)
    keys = jax.random.split(key, 10)

    # model outputs (pre-activation, NCHW -- PyTorch convention)
    outputs = [{
        'hm': jax.random.normal(keys[0], (B, 1, H, W), jnp.float32),
        'wh': jax.random.normal(keys[1], (B, 2, H, W), jnp.float32),
        'reg': jax.random.normal(keys[2], (B, 2, H, W), jnp.float32),
        'id': jax.random.normal(keys[3], (B, E, H, W), jnp.float32),
    }]

    # ground-truth batch
    gt_hm = jax.random.uniform(keys[4], (B, 1, H, W), jnp.float32, 0.0, 0.9)
    ind = jax.random.randint(keys[5], (B, K), 0, H * W, jnp.int32)
    flat = gt_hm.reshape(B, H * W)
    flat = flat.at[jnp.arange(B)[:, None], ind].set(1.0)   # exact 1.0 peaks at centers
    gt_hm = flat.reshape(B, 1, H, W)
    reg_mask = (jax.lax.broadcasted_iota(jnp.int32, (B, K), 1) < 5).astype(jnp.float32)
    wh_t = jax.random.uniform(keys[6], (B, K, 2), jnp.float32, 1.0, 20.0)
    reg_t = jax.random.uniform(keys[7], (B, K, 2), jnp.float32, 0.0, 1.0)
    ids = jax.random.randint(keys[8], (B, K), 0, NID, jnp.int32)
    ids = ids.at[0, 2].set(-1)                             # exercise ignore_index=-1

    batch = {'hm': gt_hm, 'reg_mask': reg_mask, 'ind': ind,
             'wh': wh_t, 'reg': reg_t, 'ids': ids}

    # tile_nid=256 (256-aligned) and id_tile_rows=8 exercise the multi-tile online
    # logsumexp (NT=2) and the multi-row-tile path (NR=2) at this tiny size.
    mod = MotLossPallas(reid_dim=E, nID=NID, param_key=keys[9],
                        tile_nid=256, id_tile_rows=8)
    loss, stats = mod.forward(outputs, batch)
    loss = jax.block_until_ready(loss)

    ref_loss, ref_stats = _reference_forward(mod, outputs, batch)
    assert jnp.allclose(loss, ref_loss, rtol=1e-3, atol=1e-3), (loss, ref_loss)
    for k in ('hm_loss', 'wh_loss', 'off_loss', 'id_loss'):
        assert jnp.allclose(stats[k], ref_stats[k], rtol=1e-3, atol=1e-3), (k, stats[k], ref_stats[k])

    print("KERNEL_OK")
</pallas_src>

<mosaic_0001>
module attributes {stable_mosaic.version = 11 : i64} {
  func.func @_focal_kernel(%arg0: i32, %arg1: memref<8x128xf32, #tpu.memory_space<vmem>>, %arg2: memref<8x128xf32, #tpu.memory_space<vmem>>, %arg3: memref<1x1x128xf32, #tpu.memory_space<vmem>>) attributes {dimension_semantics = [#tpu.dimension_semantics<parallel>], iteration_bounds = array<i64: 1>, scalar_prefetch = 0 : i64, scratch_operands = 0 : i64, tpu.core_type = #tpu.core_type<tc>, window_params = [{transform_indices = @transform_0, window_bounds = array<i64: 8, 128>}, {transform_indices = @transform_1, window_bounds = array<i64: 8, 128>}, {transform_indices = @transform_2, window_bounds = array<i64: 1, 1, 128>}]} {
    %c0 = arith.constant 0 : index
    %c0_0 = arith.constant 0 : index
    %0 = vector.load %arg1[%c0, %c0_0] : memref<8x128xf32, #tpu.memory_space<vmem>>, vector<8x128xf32>
    %c0_1 = arith.constant 0 : index
    %c0_2 = arith.constant 0 : index
    %1 = vector.load %arg2[%c0_1, %c0_2] : memref<8x128xf32, #tpu.memory_space<vmem>>, vector<8x128xf32>
    %2 = tpu.iota {dimensions = array<i32: 0>} : vector<8x128xi32>
    %3 = tpu.iota {dimensions = array<i32: 1>} : vector<8x128xi32>
    %c8_i32 = arith.constant 8 : i32
    %4 = arith.muli %arg0, %c8_i32 : i32
    %5 = vector.broadcast %4 : i32 to vector<8x128xi32>
    %6 = arith.addi %5, %2 : vector<8x128xi32>
    %c128_i32 = arith.constant 128 : i32
    %7 = vector.broadcast %c128_i32 : i32 to vector<8x128xi32>
    %8 = arith.muli %6, %7 : vector<8x128xi32>
    %9 = arith.addi %8, %3 : vector<8x128xi32>
    %c512_i32 = arith.constant 512 : i32
    %10 = vector.broadcast %c512_i32 : i32 to vector<8x128xi32>
    %11 = arith.cmpi slt, %9, %10 : vector<8x128xi32>
    %12 = arith.extui %11 : vector<8x128xi1> to vector<8x128xi32>
    %13 = arith.sitofp %12 : vector<8x128xi32> to vector<8x128xf32>
    %14 = arith.negf %0 : vector<8x128xf32>
    %15 = math.exp %14 : vector<8x128xf32>
    %cst = arith.constant 1.000000e+00 : f32
    %16 = vector.broadcast %cst : f32 to vector<8x128xf32>
    %17 = arith.addf %16, %15 : vector<8x128xf32>
    %18 = arith.divf %16, %17 : vector<8x128xf32>
    %cst_3 = arith.constant 9.99999974E-5 : f32
    %cst_4 = arith.constant 0.999899983 : f32
    %19 = vector.broadcast %cst_3 : f32 to vector<8x128xf32>
    %20 = arith.maximumf %19, %18 : vector<8x128xf32>
    %21 = vector.broadcast %cst_4 : f32 to vector<8x128xf32>
    %22 = arith.minimumf %21, %20 : vector<8x128xf32>
    %23 = math.log %22 : vector<8x128xf32>
    %24 = arith.subf %23, %0 : vector<8x128xf32>
    %cst_5 = arith.constant -9.21034049 : f32
    %cst_6 = arith.constant -1.000050e-04 : f32
    %25 = vector.broadcast %cst_5 : f32 to vector<8x128xf32>
    %26 = arith.maximumf %25, %24 : vector<8x128xf32>
    %27 = vector.broadcast %cst_6 : f32 to vector<8x128xf32>
    %28 = arith.minimumf %27, %26 : vector<8x128xf32>
    %cst_7 = arith.constant 1.000000e+00 : f32
    %29 = vector.broadcast %cst_7 : f32 to vector<8x128xf32>
    %30 = arith.cmpf oeq, %1, %29 : vector<8x128xf32>
    %31 = arith.extui %30 : vector<8x128xi1> to vector<8x128xi32>
    %32 = arith.sitofp %31 : vector<8x128xi32> to vector<8x128xf32>
    %33 = arith.mulf %32, %13 : vector<8x128xf32>
    %cst_8 = arith.constant 1.000000e+00 : f32
    %34 = vector.broadcast %cst_8 : f32 to vector<8x128xf32>
    %35 = arith.cmpf olt, %1, %34 : vector<8x128xf32>
    %36 = arith.extui %35 : vector<8x128xi1> to vector<8x128xi32>
    %37 = arith.sitofp %36 : vector<8x128xi32> to vector<8x128xf32>
    %38 = arith.mulf %37, %13 : vector<8x128xf32>
    %cst_9 = arith.constant 1.000000e+00 : f32
    %39 = vector.broadcast %cst_9 : f32 to vector<8x128xf32>
    %40 = arith.subf %39, %1 : vector<8x128xf32>
    %41 = arith.mulf %40, %40 : vector<8x128xf32>
    %42 = arith.mulf %41, %41 : vector<8x128xf32>
    %cst_10 = arith.constant 1.000000e+00 : f32
    %43 = vector.broadcast %cst_10 : f32 to vector<8x128xf32>
    %44 = arith.subf %43, %22 : vector<8x128xf32>
    %45 = arith.mulf %44, %44 : vector<8x128xf32>
    %46 = arith.mulf %23, %45 : vector<8x128xf32>
    %47 = arith.mulf %46, %33 : vector<8x128xf32>
    %48 = arith.mulf %22, %22 : vector<8x128xf32>
    %49 = arith.mulf %28, %48 : vector<8x128xf32>
    %50 = arith.mulf %49, %42 : vector<8x128xf32>
    %51 = arith.mulf %50, %38 : vector<8x128xf32>
    %52 = tpu.iota {dimensions = array<i32: 1>} : vector<1x128xi32>
    %c0_i32 = arith.constant 0 : i32
    %53 = vector.broadcast %c0_i32 : i32 to vector<1x128xi32>
    %54 = arith.cmpi eq, %52, %53 : vector<1x128xi32>
    %55 = vector.shape_cast %47 : vector<8x128xf32> to vector<1x8x128xf32>
    %cst_11 = arith.constant dense<0.000000e+00> : vector<1xf32>
    %56 = vector.multi_reduction <add>, %55, %cst_11 [1, 2] : vector<1x8x128xf32> to vector<1xf32>
    %57 = vector.shape_cast %56 : vector<1xf32> to vector<1x1x1xf32>
    %58 = vector.extract %57[0, 0, 0] : f32 from vector<1x1x1xf32>
    %cst_12 = arith.constant 0.000000e+00 : f32
    %59 = vector.broadcast %58 : f32 to vector<1x128xf32>
    %60 = vector.broadcast %cst_12 : f32 to vector<1x128xf32>
    %61 = arith.select %54, %59, %60 : vector<1x128xi1>, vector<1x128xf32>
    %c1_i32 = arith.constant 1 : i32
    %62 = vector.broadcast %c1_i32 : i32 to vector<1x128xi32>
    %63 = arith.cmpi eq, %52, %62 : vector<1x128xi32>
    %64 = vector.shape_cast %51 : vector<8x128xf32> to vector<1x8x128xf32>
    %cst_13 = arith.constant dense<0.000000e+00> : vector<1xf32>
    %65 = vector.multi_reduction <add>, %64, %cst_13 [1, 2] : vector<1x8x128xf32> to vector<1xf32>
    %66 = vector.shape_cast %65 : vector<1xf32> to vector<1x1x1xf32>
    %67 = vector.extract %66[0, 0, 0] : f32 from vector<1x1x1xf32>
    %cst_14 = arith.constant 0.000000e+00 : f32
    %68 = vector.broadcast %67 : f32 to vector<1x128xf32>
    %69 = vector.broadcast %cst_14 : f32 to vector<1x128xf32>
    %70 = arith.select %63, %68, %69 : vector<1x128xi1>, vector<1x128xf32>
    %71 = arith.addf %61, %70 : vector<1x128xf32>
    %c2_i32 = arith.constant 2 : i32
    %72 = vector.broadcast %c2_i32 : i32 to vector<1x128xi32>
    %73 = arith.cmpi eq, %52, %72 : vector<1x128xi32>
    %74 = vector.shape_cast %33 : vector<8x128xf32> to vector<1x8x128xf32>
    %cst_15 = arith.constant dense<0.000000e+00> : vector<1xf32>
    %75 = vector.multi_reduction <add>, %74, %cst_15 [1, 2] : vector<1x8x128xf32> to vector<1xf32>
    %76 = vector.shape_cast %75 : vector<1xf32> to vector<1x1x1xf32>
    %77 = vector.extract %76[0, 0, 0] : f32 from vector<1x1x1xf32>
    %cst_16 = arith.constant 0.000000e+00 : f32
    %78 = vector.broadcast %77 : f32 to vector<1x128xf32>
    %79 = vector.broadcast %cst_16 : f32 to vector<1x128xf32>
    %80 = arith.select %73, %78, %79 : vector<1x128xi1>, vector<1x128xf32>
    %81 = arith.addf %71, %80 : vector<1x128xf32>
    %c0_17 = arith.constant 0 : index
    %c0_18 = arith.constant 0 : index
    %c0_19 = arith.constant 0 : index
    %82 = vector.load %arg3[%c0_17, %c0_18, %c0_19] : memref<1x1x128xf32, #tpu.memory_space<vmem>>, vector<1x1x128xf32>
    %83 = vector.shape_cast %82 : vector<1x1x128xf32> to vector<1x128xf32>
    %84 = vector.shape_cast %81 : vector<1x128xf32> to vector<1x1x128xf32>
    tpu.vector_store %arg3[%c0_17, %c0_18, %c0_19], %84 {strides = array<i32>} : memref<1x1x128xf32, #tpu.memory_space<vmem>>, vector<1x1x128xf32>,
    return
  }
  func.func @transform_0(%arg0: i32) -> (i32, i32) {
    %c0_i32 = arith.constant 0 : i32
    %c0_i32_0 = arith.constant 0 : i32
    return %arg0, %c0_i32 : i32, i32
  }
  func.func @transform_1(%arg0: i32) -> (i32, i32) {
    %c0_i32 = arith.constant 0 : i32
    %c0_i32_0 = arith.constant 0 : i32
    return %arg0, %c0_i32 : i32, i32
  }
  func.func @transform_2(%arg0: i32) -> (i32, i32, i32) {
    %c0_i32 = arith.constant 0 : i32
    %c0_i32_0 = arith.constant 0 : i32
    %c0_i32_1 = arith.constant 0 : i32
    return %arg0, %c0_i32, %c0_i32_0 : i32, i32, i32
  }
}

</mosaic_0001>

<llo_original>
// kernel: tpu_custom_call.1
$region0: #{tpu_custom_call.1}
  #allocation0 [shape = 'u32[]', space=smem, size = 0x4, offset = 0x4, fixed_abs, tag = 'smem constant byte address 0x4 - core index']
  #allocation1 [shape = 'u32[144,128]{1,0:T(1,128)}', space=vmem, size = 0x12000, scoped, tag = 'internal scratch']
  %s0 = inlined_call_operand.hbm [shape: f32[8,128], index: 0, kind: input, shape index: {}]
  %s1 = inlined_call_operand.hbm [shape: f32[8,128], index: 1, kind: input, shape index: {}]
  %s2 = inlined_call_operand.hbm [shape: f32[1,1,128], index: 2, kind: output, shape index: {}]
  %s3 = sld [smem:[#allocation0]]
  $region26: #{tpu_custom_call.1} parent=0
    _
  %s5 = ssub.s32 1, %s3
  %s6 = scalar_select 0, %s5, %s3
  $region1: #{tpu_custom_call.1} parent=0
    #allocation2 [shape = 'u8[4096]{0}', space=vmem, size = 0x1000, scoped, tag = 'input window, operand 0, single buffered']
    #allocation3 [shape = 's32[1]{0}', space=sflag, size = 0x4, scoped, tag = 'scoped memory for tpu_custom_call.1']
    #allocation4 [shape = 's32[1]{0}', space=sflag, size = 0x4, scoped, tag = 'scoped memory for tpu_custom_call.1']
    #allocation5 [shape = 'u8[4096]{0}', space=vmem, size = 0x1000, scoped, tag = 'input window, operand 1, single buffered']
    #allocation6 [shape = 's32[1]{0}', space=sflag, size = 0x4, scoped, tag = 'scoped memory for tpu_custom_call.1']
    #allocation7 [shape = 'u8[512]{0}', space=vmem, size = 0x400, scoped, tag = 'output window, operand 0, single buffered']
    %7 = vsyncpa [#allocation3], 0
    %8 = vsyncpa [#allocation6], 0
    %9 = vsyncpa [#allocation4], 0
    // Predicated region
    $region2: #{tpu_custom_call.1} parent=1 // pred_check
      _
    $region3: #{tpu_custom_call.1} parent=1 // pred_check_branch
      %11 = sbr.rel (0) target = $region5
    $region4: #{tpu_custom_call.1} parent=1 // pred_region
      %s13 = ssub.s32 128, 128
      %14 = vsyncadd [#allocation3], %s13
      %s16 = sshll.u32 [#allocation2], 4
      %s17 = int_to_ptr.vmem [resolvable:$true] %s16
      %19 = dma.hbm_to_vmem [thread:$0]  %s0, 128, %s17, [#allocation3]
    $region5: #{tpu_custom_call.1} parent=1 // pred_fallthru
      _
    // Predicated region
    $region6: #{tpu_custom_call.1} parent=1 // pred_check
      _
    $region7: #{tpu_custom_call.1} parent=1 // pred_check_branch
      %21 = sbr.rel (0) target = $region9
    $region8: #{tpu_custom_call.1} parent=1 // pred_region
      %s23 = ssub.s32 128, 128
      %24 = vsyncadd [#allocation6], %s23
      %s26 = sshll.u32 [#allocation5], 4
      %s27 = int_to_ptr.vmem [resolvable:$true] %s26
      %29 = dma.hbm_to_vmem [thread:$0]  %s1, 128, %s27, [#allocation6]
    $region9: #{tpu_custom_call.1} parent=1 // pred_fallthru
      _
    // Predicated region
    $region10: #{tpu_custom_call.1} parent=1 // pred_check
      _
    $region11: #{tpu_custom_call.1} parent=1 // pred_check_branch
      %31 = sbr.rel (0) target = $region13
    $region12: #{tpu_custom_call.1} parent=1 // pred_region
      %32 = dma.done [#allocation3], 128
    $region13: #{tpu_custom_call.1} parent=1 // pred_fallthru
      _
    // Predicated region
    $region14: #{tpu_custom_call.1} parent=1 // pred_check
      _
    $region15: #{tpu_custom_call.1} parent=1 // pred_check_branch
      %34 = sbr.rel (0) target = $region17
    $region16: #{tpu_custom_call.1} parent=1 // pred_region
      %35 = dma.done [#allocation6], 128
    $region17: #{tpu_custom_call.1} parent=1 // pred_fallthru
      _
    %v36 = vld [vmem:[#allocation2] sm:$0xff]
    %v37 = vld [vmem:[#allocation5] sm:$0xff]
    %v38 = vlaneseq
    %v39 = vshrl.u32 %v38, 7
    %v40 = vlaneseq
    %v41 = vand.u32 %v40, 127
    %s42 = smul.u32 0, 8
    %v43 = vstv %s42
    %v44 = vadd.s32 %v43, %v39
    %v45 = vmul.u32 %v44, 128
    %v46 = vadd.s32 %v45, %v41
    %vm47 = vcmp.lt.s32.totalorder %v46, 512
    %v48 = vsel %vm47, 1, 0
    %v49 = vcvt.s32.f32 %v48
    %v50 = vxor.u32 %v36, 2147483648
    %v51 = vmul.f32 %v50, 1.442695
    %v52 = vpow.pop %v51
    %v53 = vadd.f32 %v52, 1.0
    %v54 = vrcp.pop %v53
    %v55 = vmul.f32 1.0, %v54
    %v56 = vmax.f32 %v55, 0.0001
    %v57 = vmin.f32 %v56, 0.9999
    %v58 = vlog2.pop %v57
    %v59 = vmul.f32 %v58, 0.6931472
    %v60 = vsub.f32 %v59, %v36
    %v61 = vmax.f32 %v60, -9.2103405
    %v62 = vmin.f32 %v61, -0.000100005
    %vm63 = vcmp.eq.f32.partialorder %v37, 1.0
    %v64 = vsel %vm63, 1, 0
    %v65 = vcvt.s32.f32 %v64
    %v66 = vmul.f32 %v65, %v49
    %vm67 = vcmp.lt.f32.partialorder %v37, 1.0
    %v68 = vsel %vm67, 1, 0
    %v69 = vcvt.s32.f32 %v68
    %v70 = vmul.f32 %v69, %v49
    %v71 = vsub.f32 1.0, %v37
    %v72 = vmul.f32 %v71, %v71
    %v73 = vmul.f32 %v72, %v72
    %v74 = vsub.f32 1.0, %v57
    %v75 = vmul.f32 %v74, %v74
    %v76 = vmul.f32 %v59, %v75
    %v77 = vmul.f32 %v76, %v66
    %v78 = vmul.f32 %v57, %v57
    %v79 = vmul.f32 %v62, %v78
    %v80 = vmul.f32 %v79, %v73
    %v81 = vmul.f32 %v80, %v70
    %vm82 = vcmp.eq.s32.totalorder %v41, 0
    %83 = vadd.xlane.f32.xlu0 %v77
    %v84 = vpop.xlane.xlu0 %83
    %v85 = vrot.slane %v84, 4
    %v86 = vadd.f32 %v84, %v85
    %v87 = vrot.slane %v86, 2
    %v88 = vadd.f32 %v86, %v87
    %v89 = vrot.slane %v88, 1
    %v90 = vadd.f32 %v88, %v89
    %s91 = vtos %v90
    %v92 = vstv %s91
    %v93 = vsel %vm82, %v92, 0.0
    %vm94 = vcmp.eq.s32.totalorder %v41, 1
    %95 = vadd.xlane.f32.xlu0 %v81
    %v96 = vpop.xlane.xlu0 %95
    %v97 = vrot.slane %v96, 4
    %v98 = vadd.f32 %v96, %v97
    %v99 = vrot.slane %v98, 2
    %v100 = vadd.f32 %v98, %v99
    %v101 = vrot.slane %v100, 1
    %v102 = vadd.f32 %v100, %v101
    %s103 = vtos %v102
    %v104 = vstv %s103
    %v105 = vsel %vm94, %v104, 0.0
    %v106 = vadd.f32 %v93, %v105
    %vm107 = vcmp.eq.s32.totalorder %v41, 2
    %108 = vadd.xlane.f32.xlu0 %v66
    %v109 = vpop.xlane.xlu0 %108
    %v110 = vrot.slane %v109, 4
    %v111 = vadd.f32 %v109, %v110
    %v112 = vrot.slane %v111, 2
    %v113 = vadd.f32 %v111, %v112
    %v114 = vrot.slane %v113, 1
    %v115 = vadd.f32 %v113, %v114
    %s116 = vtos %v115
    %v117 = vstv %s116
    %v118 = vsel %vm107, %v117, 0.0
    %v119 = vadd.f32 %v106, %v118
    %120 = vst [vmem:[#allocation7] sm:$0x1] %v119
    // Predicated region
    $region18: #{tpu_custom_call.1} parent=1 // pred_check
      _
    $region19: #{tpu_custom_call.1} parent=1 // pred_check_branch
      %122 = sbr.rel (0) target = $region21
    $region20: #{tpu_custom_call.1} parent=1 // pred_region
      %s124 = ssub.s32 16, 16
      %125 = vsyncadd [#allocation4], %s124
      %s127 = sshll.u32 [#allocation7], 4
      %s128 = int_to_ptr.vmem [resolvable:$true] %s127
      %130 = dma.vmem_to_hbm [thread:$0]  %s128, 16, %s2, [#allocation4]
    $region21: #{tpu_custom_call.1} parent=1 // pred_fallthru
      _
    // Predicated region
    $region22: #{tpu_custom_call.1} parent=1 // pred_check
      _
    $region23: #{tpu_custom_call.1} parent=1 // pred_check_branch
      %132 = sbr.rel (0) target = $region25
    $region24: #{tpu_custom_call.1} parent=1 // pred_region
      %133 = dma.done [#allocation4], 16
    $region25: #{tpu_custom_call.1} parent=1 // pred_fallthru
      _
    %134 = vsyncpa [#allocation3], 1
    %135 = vsyncpa [#allocation6], 1
    %136 = vsyncpa [#allocation4], 1

</llo_original>
